<compile_context>
chip_gen: v7x
topology: tpu7x:2x2x1
jax: 0.10.0
libtpu: 0.0.40
codegen_flags: <defaults>
</compile_context>

<pallas_src>
import functools

import jax
import jax.numpy as jnp
from jax import lax
from jax.experimental import pallas as pl
from jax.experimental.pallas import tpu as pltpu

_LANE = 128
_SUBLANE = 8
# 2048 rows * 128 lanes * 4 B = 1 MiB per f32 tile (2 MiB double-buffered):
# comfortably inside the default scoped VMEM on v5e/v6e/v7x and past the
# measured ~85% HBM-roofline plateau for mem-bound tiled kernels.
_MAX_TILE_ROWS = 2048


def _cdiv(a, b):
    return -(-a // b)


def _round_up(a, b):
    return _cdiv(a, b) * b


def _minmax_kernel(x_ref, min_ref, max_ref, min_acc, max_acc, *,
                   tile_rows, steps_per_core, rows, need_mask):
    """Grid = (ncores [parallel], steps_per_core [arbitrary]).

    x_ref:   (tile_rows, 128) tile of the flattened input (native dtype).
    min_ref/max_ref: (1, 1, 1) per-core partial results.
    min_acc/max_acc: (8, 128) f32 lane/sublane-resident accumulators (scratch).
    """
    c = pl.program_id(0)  # core-split axis
    k = pl.program_id(1)  # reduction axis

    @pl.when(k == 0)
    def _init():
        min_acc[...] = jnp.full_like(min_acc, jnp.inf)
        max_acc[...] = jnp.full_like(max_acc, -jnp.inf)

    # Cast to the buffer dtype (f32) right after the load (keeps the compare
    # path in f32 vregs on v5e as well; exact for min/max).
    tile = x_ref[...].astype(jnp.float32)  # (tile_rows, 128)
    groups = tile_rows // _SUBLANE

    def _fold(tmin, tmax):
        # Fold the tile into the (8, 128) accumulators with elementwise
        # min/max only (VPU; no per-step cross-lane reduction).
        tmin = jnp.min(tmin.reshape(groups, _SUBLANE, _LANE), axis=0)
        tmax = jnp.max(tmax.reshape(groups, _SUBLANE, _LANE), axis=0)
        min_acc[...] = jnp.minimum(min_acc[...], tmin)
        max_acc[...] = jnp.maximum(max_acc[...], tmax)

    if need_mask:
        base = (c * steps_per_core + k) * tile_rows
        straddles = base + tile_rows > rows  # ragged or clamped-duplicate block

        @pl.when(jnp.logical_not(straddles))
        def _full_tile():
            _fold(tile, tile)

        @pl.when(straddles)
        def _ragged_tile():
            # Rows beyond the valid range are replaced with +/-inf (neutral
            # for min/max). Only this block pays the iota/select cost.
            ridx = base + lax.broadcasted_iota(jnp.int32, (tile_rows, _LANE), 0)
            valid = ridx < rows
            _fold(jnp.where(valid, tile, jnp.inf),
                  jnp.where(valid, tile, -jnp.inf))
    else:
        _fold(tile, tile)

    # Single cross-lane/sublane reduce per core, in the epilogue only.
    @pl.when(k == pl.num_programs(1) - 1)
    def _finalize():
        min_ref[...] = jnp.min(min_acc[...]).reshape(1, 1, 1)
        max_ref[...] = jnp.max(max_acc[...]).reshape(1, 1, 1)


@jax.jit
def _forward(x, min_val, max_val):
    """Full observer update in one dispatch: returns (new_min, new_max) f32."""
    x_flat = lax.stop_gradient(x).reshape(-1)
    n = x_flat.shape[0]
    rows = n // _LANE
    rem = n - rows * _LANE

    mins, maxs = [], []
    tail = None

    if rows >= _SUBLANE:
        main_elems = rows * _LANE
        if rem:
            # TODO(synk): when numel is not a multiple of 128 the main body
            # needs one slice copy; the <128-element tail is reduced below.
            x_main = lax.slice(x_flat, (0,), (main_elems,))
            tail = lax.slice(x_flat, (main_elems,), (n,))
        else:
            x_main = x_flat  # free reshape, no copy
        x2d = x_main.reshape(rows, _LANE)

        tile_rows = min(_MAX_TILE_ROWS, _round_up(rows, _SUBLANE))
        total_blocks = _cdiv(rows, tile_rows)
        ncores = 2 if total_blocks >= 2 else 1  # v7x megacore split
        steps_per_core = _cdiv(total_blocks, ncores)
        need_mask = (ncores * steps_per_core * tile_rows) != rows
        last_block = total_blocks - 1

        kernel = functools.partial(
            _minmax_kernel,
            tile_rows=tile_rows,
            steps_per_core=steps_per_core,
            rows=rows,
            need_mask=need_mask,
        )

        def x_map(c, k):
            # Clamp so duplicate (padding) blocks stay in bounds; they are
            # fully masked inside the kernel via the unclamped row index.
            return (jnp.minimum(c * steps_per_core + k, last_block), 0)

        min_p, max_p = pl.pallas_call(
            kernel,
            out_shape=(
                jax.ShapeDtypeStruct((ncores, 1, 1), jnp.float32),
                jax.ShapeDtypeStruct((ncores, 1, 1), jnp.float32),
            ),
            grid_spec=pltpu.PrefetchScalarGridSpec(
                num_scalar_prefetch=0,
                grid=(ncores, steps_per_core),
                in_specs=[pl.BlockSpec((tile_rows, _LANE), x_map)],
                out_specs=[
                    pl.BlockSpec((1, 1, 1), lambda c, k: (c, 0, 0)),
                    pl.BlockSpec((1, 1, 1), lambda c, k: (c, 0, 0)),
                ],
                scratch_shapes=[
                    pltpu.VMEM((_SUBLANE, _LANE), jnp.float32),
                    pltpu.VMEM((_SUBLANE, _LANE), jnp.float32),
                ],
            ),
            compiler_params=pltpu.CompilerParams(
                dimension_semantics=("parallel", "arbitrary"),
            ),
        )(x2d)

        mins.append(jnp.min(min_p))
        maxs.append(jnp.max(max_p))
    else:
        tail = x_flat  # tiny input: pure-jnp path

    if tail is not None and tail.shape[0] > 0:
        t32 = tail.astype(jnp.float32)
        mins.append(jnp.min(t32))
        maxs.append(jnp.max(t32))

    cur_min = functools.reduce(jnp.minimum, mins)
    cur_max = functools.reduce(jnp.maximum, maxs)

    # Fold the running buffers (equivalent of torch.min(cur, self.min_val)).
    return jnp.minimum(cur_min, min_val), jnp.maximum(cur_max, max_val)


class MyMinMaxObserver:
    """JAX/Pallas port of myMinMaxObserver (buffers held functionally on the object)."""

    def __init__(self):
        self.min_val = jnp.array(jnp.inf, dtype=jnp.float32)
        self.max_val = jnp.array(-jnp.inf, dtype=jnp.float32)

    def reset_min_max_vals(self):
        self.min_val = jnp.array(jnp.inf, dtype=jnp.float32)
        self.max_val = jnp.array(-jnp.inf, dtype=jnp.float32)

    def __call__(self, x_orig):
        if x_orig.size == 0:
            return x_orig
        self.min_val, self.max_val = _forward(x_orig, self.min_val, self.max_val)
        return x_orig


if __name__ == "__main__":
    key = jax.random.PRNGKey(0)
    x = jax.random.normal(key, (2, 4, 16, 16), dtype=jnp.float32)  # NCHW

    obs = MyMinMaxObserver()

    # First call: running buffers start at +/- inf.
    y = obs(x)
    jax.block_until_ready(y)
    jax.block_until_ready(obs.min_val)
    jax.block_until_ready(obs.max_val)

    # Forward returns input unchanged; buffers match global aminmax.
    assert y.shape == x.shape and y.dtype == x.dtype
    assert bool(jnp.all(y == x))
    ref_min = jnp.min(x.astype(jnp.float32))
    ref_max = jnp.max(x.astype(jnp.float32))
    assert jnp.allclose(obs.min_val, ref_min), (obs.min_val, ref_min)
    assert jnp.allclose(obs.max_val, ref_max), (obs.max_val, ref_max)

    # Second call with a narrower-range input: running min/max must persist.
    x2 = 0.1 * jax.random.normal(jax.random.PRNGKey(1), (2, 4, 16, 16), jnp.float32)
    _ = obs(x2)
    jax.block_until_ready(obs.min_val)
    exp_min = jnp.minimum(ref_min, jnp.min(x2))
    exp_max = jnp.maximum(ref_max, jnp.max(x2))
    assert jnp.allclose(obs.min_val, exp_min)
    assert jnp.allclose(obs.max_val, exp_max)

    # Third call with a larger, ragged-tiled, bf16 input: exercises big tiles,
    # the 2-way parallel split, the runtime-gated row mask, and the
    # native-dtype HBM read path.
    x3 = (5.0 * jax.random.normal(jax.random.PRNGKey(2), (3, 7, 33, 65), jnp.float32)
          ).astype(jnp.bfloat16)
    _ = obs(x3)
    jax.block_until_ready(obs.min_val)
    exp_min = jnp.minimum(exp_min, jnp.min(x3.astype(jnp.float32)))
    exp_max = jnp.maximum(exp_max, jnp.max(x3.astype(jnp.float32)))
    assert jnp.allclose(obs.min_val, exp_min), (obs.min_val, exp_min)
    assert jnp.allclose(obs.max_val, exp_max), (obs.max_val, exp_max)

    print("KERNEL_OK")
</pallas_src>

<mosaic_0001>
module attributes {stable_mosaic.version = 11 : i64} {
  func.func @_minmax_kernel(%arg0: i32, %arg1: i32, %arg2: memref<16x128xf32, #tpu.memory_space<vmem>>, %arg3: memref<1x1x1xf32, #tpu.memory_space<vmem>>, %arg4: memref<1x1x1xf32, #tpu.memory_space<vmem>>, %arg5: memref<8x128xf32, #tpu.memory_space<vmem>>, %arg6: memref<8x128xf32, #tpu.memory_space<vmem>>) attributes {dimension_semantics = [#tpu.dimension_semantics<parallel>, #tpu.dimension_semantics<arbitrary>], iteration_bounds = array<i64: 1, 1>, scalar_prefetch = 0 : i64, scratch_operands = 2 : i64, tpu.core_type = #tpu.core_type<tc>, window_params = [{transform_indices = @transform_0, window_bounds = array<i64: 16, 128>}, {transform_indices = @transform_1, window_bounds = array<i64: 1, 1, 1>}, {transform_indices = @transform_2, window_bounds = array<i64: 1, 1, 1>}]} {
    %c0_i32 = arith.constant 0 : i32
    %0 = arith.cmpi eq, %arg1, %c0_i32 : i32
    %1 = arith.extui %0 : i1 to i32
    %c0_i32_0 = arith.constant 0 : i32
    %2 = arith.cmpi ne, %1, %c0_i32_0 : i32
    scf.if %2 {
      %cst_13 = arith.constant 0x7F800000 : f32
      %17 = vector.broadcast %cst_13 : f32 to vector<8x128xf32>
      %c0_14 = arith.constant 0 : index
      %c0_15 = arith.constant 0 : index
      %18 = vector.load %arg5[%c0_14, %c0_15] : memref<8x128xf32, #tpu.memory_space<vmem>>, vector<8x128xf32>
      tpu.vector_store %arg5[%c0_14, %c0_15], %17 {strides = array<i32>} : memref<8x128xf32, #tpu.memory_space<vmem>>, vector<8x128xf32>,
      %cst_16 = arith.constant 0xFF800000 : f32
      %19 = vector.broadcast %cst_16 : f32 to vector<8x128xf32>
      %c0_17 = arith.constant 0 : index
      %c0_18 = arith.constant 0 : index
      %20 = vector.load %arg6[%c0_17, %c0_18] : memref<8x128xf32, #tpu.memory_space<vmem>>, vector<8x128xf32>
      tpu.vector_store %arg6[%c0_17, %c0_18], %19 {strides = array<i32>} : memref<8x128xf32, #tpu.memory_space<vmem>>, vector<8x128xf32>,
    } else {
    }
    %c0 = arith.constant 0 : index
    %c0_1 = arith.constant 0 : index
    %3 = vector.load %arg2[%c0, %c0_1] : memref<16x128xf32, #tpu.memory_space<vmem>>, vector<16x128xf32>
    %4 = vector.shape_cast %3 : vector<16x128xf32> to vector<2x8x128xf32>
    %cst = arith.constant dense<0x7F800000> : vector<8x128xf32>
    %5 = vector.multi_reduction <minimumf>, %4, %cst [0] : vector<2x8x128xf32> to vector<8x128xf32>
    %6 = vector.shape_cast %3 : vector<16x128xf32> to vector<2x8x128xf32>
    %cst_2 = arith.constant dense<0xFF800000> : vector<8x128xf32>
    %7 = vector.multi_reduction <maximumf>, %6, %cst_2 [0] : vector<2x8x128xf32> to vector<8x128xf32>
    %c0_3 = arith.constant 0 : index
    %c0_4 = arith.constant 0 : index
    %8 = vector.load %arg5[%c0_3, %c0_4] : memref<8x128xf32, #tpu.memory_space<vmem>>, vector<8x128xf32>
    %9 = arith.minimumf %8, %5 : vector<8x128xf32>
    %c0_5 = arith.constant 0 : index
    %c0_6 = arith.constant 0 : index
    %10 = vector.load %arg5[%c0_5, %c0_6] : memref<8x128xf32, #tpu.memory_space<vmem>>, vector<8x128xf32>
    tpu.vector_store %arg5[%c0_5, %c0_6], %9 {strides = array<i32>} : memref<8x128xf32, #tpu.memory_space<vmem>>, vector<8x128xf32>,
    %c0_7 = arith.constant 0 : index
    %c0_8 = arith.constant 0 : index
    %11 = vector.load %arg6[%c0_7, %c0_8] : memref<8x128xf32, #tpu.memory_space<vmem>>, vector<8x128xf32>
    %12 = arith.maximumf %11, %7 : vector<8x128xf32>
    %c0_9 = arith.constant 0 : index
    %c0_10 = arith.constant 0 : index
    %13 = vector.load %arg6[%c0_9, %c0_10] : memref<8x128xf32, #tpu.memory_space<vmem>>, vector<8x128xf32>
    tpu.vector_store %arg6[%c0_9, %c0_10], %12 {strides = array<i32>} : memref<8x128xf32, #tpu.memory_space<vmem>>, vector<8x128xf32>,
    %c0_i32_11 = arith.constant 0 : i32
    %14 = arith.cmpi eq, %arg1, %c0_i32_11 : i32
    %15 = arith.extui %14 : i1 to i32
    %c0_i32_12 = arith.constant 0 : i32
    %16 = arith.cmpi ne, %15, %c0_i32_12 : i32
    scf.if %16 {
      %c0_13 = arith.constant 0 : index
      %c0_14 = arith.constant 0 : index
      %17 = vector.load %arg5[%c0_13, %c0_14] : memref<8x128xf32, #tpu.memory_space<vmem>>, vector<8x128xf32>
      %18 = vector.shape_cast %17 : vector<8x128xf32> to vector<1x8x128xf32>
      %cst_15 = arith.constant dense<0x7F800000> : vector<1xf32>
      %19 = vector.multi_reduction <minimumf>, %18, %cst_15 [1, 2] : vector<1x8x128xf32> to vector<1xf32>
      %20 = vector.shape_cast %19 : vector<1xf32> to vector<1x1x1xf32>
      %21 = vector.extract %20[0, 0, 0] : f32 from vector<1x1x1xf32>
      %22 = vector.broadcast %21 : f32 to vector<1x1x1xf32>
      %c0_16 = arith.constant 0 : index
      %c0_17 = arith.constant 0 : index
      %c0_18 = arith.constant 0 : index
      %23 = vector.load %arg3[%c0_16, %c0_17, %c0_18] : memref<1x1x1xf32, #tpu.memory_space<vmem>>, vector<1x1x1xf32>
      tpu.vector_store %arg3[%c0_16, %c0_17, %c0_18], %22 {strides = array<i32>} : memref<1x1x1xf32, #tpu.memory_space<vmem>>, vector<1x1x1xf32>,
      %c0_19 = arith.constant 0 : index
      %c0_20 = arith.constant 0 : index
      %24 = vector.load %arg6[%c0_19, %c0_20] : memref<8x128xf32, #tpu.memory_space<vmem>>, vector<8x128xf32>
      %25 = vector.shape_cast %24 : vector<8x128xf32> to vector<1x8x128xf32>
      %cst_21 = arith.constant dense<0xFF800000> : vector<1xf32>
      %26 = vector.multi_reduction <maximumf>, %25, %cst_21 [1, 2] : vector<1x8x128xf32> to vector<1xf32>
      %27 = vector.shape_cast %26 : vector<1xf32> to vector<1x1x1xf32>
      %28 = vector.extract %27[0, 0, 0] : f32 from vector<1x1x1xf32>
      %29 = vector.broadcast %28 : f32 to vector<1x1x1xf32>
      %c0_22 = arith.constant 0 : index
      %c0_23 = arith.constant 0 : index
      %c0_24 = arith.constant 0 : index
      %30 = vector.load %arg4[%c0_22, %c0_23, %c0_24] : memref<1x1x1xf32, #tpu.memory_space<vmem>>, vector<1x1x1xf32>
      tpu.vector_store %arg4[%c0_22, %c0_23, %c0_24], %29 {strides = array<i32>} : memref<1x1x1xf32, #tpu.memory_space<vmem>>, vector<1x1x1xf32>,
    } else {
    }
    return
  }
  func.func @transform_0(%arg0: i32, %arg1: i32) -> (i32, i32) {
    %c1_i32 = arith.constant 1 : i32
    %0 = arith.muli %arg0, %c1_i32 : i32
    %1 = arith.addi %0, %arg1 : i32
    %c0_i32 = arith.constant 0 : i32
    %2 = arith.minsi %1, %c0_i32 : i32
    %c0_i32_0 = arith.constant 0 : i32
    %c0_i32_1 = arith.constant 0 : i32
    return %2, %c0_i32_0 : i32, i32
  }
  func.func @transform_1(%arg0: i32, %arg1: i32) -> (i32, i32, i32) {
    %c0_i32 = arith.constant 0 : i32
    %c0_i32_0 = arith.constant 0 : i32
    %c0_i32_1 = arith.constant 0 : i32
    return %arg0, %c0_i32, %c0_i32_0 : i32, i32, i32
  }
  func.func @transform_2(%arg0: i32, %arg1: i32) -> (i32, i32, i32) {
    %c0_i32 = arith.constant 0 : i32
    %c0_i32_0 = arith.constant 0 : i32
    %c0_i32_1 = arith.constant 0 : i32
    return %arg0, %c0_i32, %c0_i32_0 : i32, i32, i32
  }
}

</mosaic_0001>

<llo_original>
// kernel: _forward.1
$region0: #{_forward.1}
  #allocation0 [shape = 'u32[]', space=smem, size = 0x4, offset = 0x4, fixed_abs, tag = 'smem constant byte address 0x4 - core index']
  #allocation1 [shape = 'u32[144,128]{1,0:T(1,128)}', space=vmem, size = 0x12000, scoped, tag = 'internal scratch']
  #allocation2 [shape = 'f32[8,128]{1,0:T(8,128)}', space=vmem, size = 0x1000, scoped, tag = 'scratch operand']
  #allocation3 [shape = 'f32[8,128]{1,0:T(8,128)}', space=vmem, size = 0x1000, scoped, tag = 'scratch operand']
  %s0 = inlined_call_operand.vmem [shape: f32[16,128], index: 0, kind: input, shape index: {}]
  %s1 = inlined_call_operand.hbm [shape: f32[1,1,1], index: 1, kind: output, shape index: {0}]
  %s2 = inlined_call_operand.hbm [shape: f32[1,1,1], index: 2, kind: output, shape index: {1}]
  %3 = xla_tuple %s1, %s2
  %s4 = sld [smem:[#allocation0]]
  $region30: #{_forward.1} parent=0
    _
  %s6 = ssub.s32 1, %s4
  %s7 = scalar_select 0, %s6, %s4
  $region1: #{_forward.1} parent=0
    #allocation4 [shape = 'u8[512]{0}', space=vmem, size = 0x400, scoped, tag = 'output window, operand 0, single buffered']
    #allocation5 [shape = 's32[1]{0}', space=sflag, size = 0x4, scoped, tag = 'scoped memory for _forward.1']
    #allocation6 [shape = 'u8[512]{0}', space=vmem, size = 0x400, scoped, tag = 'output window, operand 1, single buffered']
    #allocation7 [shape = 's32[1]{0}', space=sflag, size = 0x4, scoped, tag = 'scoped memory for _forward.1']
    %8 = vsyncpa [#allocation5], 0
    %9 = vsyncpa [#allocation7], 0
    // Predicated region
    $region2: #{_forward.1} parent=1 // pred_check
      _
    $region3: #{_forward.1} parent=1 // pred_check_branch
      %11 = sbr.rel (0) target = $region5
    $region4: #{_forward.1} parent=1 // pred_region
      %s12 = sadd.s32 0, 0
      %p13 = scmp.lt.s32.totalorder %s12, 0
      %s14 = scalar_select %p13, %s12, 0
      %s15 = smul.u32 2, %s14
      %p16 = scmp.lt.s32.totalorder %s15, 1
      %s17 = scalar_select %p16, %s15, 1
      %s18 = smul.addr %s17, 8
      %s19 = scalar_lea.vmem %s0, %s18
      %s20 = sadd.s32 0, 0
      %p21 = scmp.lt.s32.totalorder %s20, 0
      %s22 = scalar_select %p21, %s20, 0
      %s23 = smul.u32 2, %s22
    $region5: #{_forward.1} parent=1 // pred_fallthru
      _
    %s24 = sadd.s32 0, 0
    %p25 = scmp.lt.s32.totalorder %s24, 0
    %s26 = scalar_select %p25, %s24, 0
    %s27 = smul.u32 2, %s26
    %p28 = scmp.lt.s32.totalorder %s27, 1
    %s29 = scalar_select %p28, %s27, 1
    %s30 = smul.addr %s29, 8
    %s31 = scalar_lea.vmem %s0, %s30
    %s32 = sadd.s32 0, 0
    %p33 = scmp.lt.s32.totalorder %s32, 0
    %s34 = scalar_select %p33, %s32, 0
    %s35 = smul.u32 2, %s34
    %p36 = scmp.lt.s32.totalorder %s35, 1
    %s37 = scalar_select %p36, %s35, 1
    %s38 = smul.addr %s37, 8
    %s39 = scalar_lea.vmem %s0, %s38
    %s40 = sadd.s32 0, 0
    %p41 = scmp.lt.s32.totalorder %s40, 0
    %s42 = scalar_select %p41, %s40, 0
    %s43 = smul.u32 2, %s42
    %p44 = scmp.eq.s32.totalorder 0, 0
    // Predicated region
    $region6: #{_forward.1} parent=1 // pred_check
      %p45 = pneg %p44
    $region7: #{_forward.1} parent=1 // pred_check_branch
      %47 = sbr.rel (%p45) target = $region9
    $region8: #{_forward.1} parent=1 // pred_region
      %48 = vst [vmem:[#allocation2] sm:$0xff] inf
      %49 = vst [vmem:[#allocation3] sm:$0xff] -inf
    $region9: #{_forward.1} parent=1 // pred_fallthru
      _
    %v50 = vld [vmem:[%s39] sm:$0xff]
    %v51 = vld [vmem:[%s39 + $0x8] sm:$0xff]
    %v52 = vmin.f32 %v50, %v51
    %v53 = vmax.f32 %v50, %v51
    %v54 = vld [vmem:[#allocation2] sm:$0xff]
    %v55 = vmin.f32 %v54, %v52
    %56 = vst [vmem:[#allocation2] sm:$0xff] %v55
    %v57 = vld [vmem:[#allocation3] sm:$0xff]
    %v58 = vmax.f32 %v57, %v53
    %59 = vst [vmem:[#allocation3] sm:$0xff] %v58
    // Predicated region
    $region10: #{_forward.1} parent=1 // pred_check
      %p60 = pneg %p44
    $region11: #{_forward.1} parent=1 // pred_check_branch
      %62 = sbr.rel (%p60) target = $region13
    $region12: #{_forward.1} parent=1 // pred_region
      %v63 = vld [vmem:[#allocation2] sm:$0xff]
      %64 = vmin.xlane.f32.xlu0 %v63
      %v65 = vpop.xlane.xlu0 %64
      %v66 = vrot.slane %v65, 4
      %v67 = vmin.f32 %v65, %v66
      %v68 = vrot.slane %v67, 2
      %v69 = vmin.f32 %v67, %v68
      %v70 = vrot.slane %v69, 1
      %v71 = vmin.f32 %v69, %v70
      %s72 = vtos %v71
      %v73 = vstv %s72
      %vm74 = vcmask 0
      %75 = vst.msk [vmem:[#allocation4] sm:$0x1] %vm74, %v73
      %v76 = vld [vmem:[#allocation3] sm:$0xff]
      %77 = vmax.xlane.f32.xlu0 %v76
      %v78 = vpop.xlane.xlu0 %77
      %v79 = vrot.slane %v78, 4
      %v80 = vmax.f32 %v78, %v79
      %v81 = vrot.slane %v80, 2
      %v82 = vmax.f32 %v80, %v81
      %v83 = vrot.slane %v82, 1
      %v84 = vmax.f32 %v82, %v83
      %s85 = vtos %v84
      %v86 = vstv %s85
      %87 = vst.msk [vmem:[#allocation6] sm:$0x1] %vm74, %v86
    $region13: #{_forward.1} parent=1 // pred_fallthru
      _
    // Predicated region
    $region14: #{_forward.1} parent=1 // pred_check
      _
    $region15: #{_forward.1} parent=1 // pred_check_branch
      %89 = sbr.rel (0) target = $region17
    $region16: #{_forward.1} parent=1 // pred_region
      %s91 = ssub.s32 16, 16
      %92 = vsyncadd [#allocation5], %s91
      %s94 = sshll.u32 [#allocation4], 4
      %s95 = int_to_ptr.vmem [resolvable:$true] %s94
      %97 = dma.vmem_to_hbm [thread:$0]  %s95, 16, %s1, [#allocation5]
    $region17: #{_forward.1} parent=1 // pred_fallthru
      _
    // Predicated region
    $region18: #{_forward.1} parent=1 // pred_check
      _
    $region19: #{_forward.1} parent=1 // pred_check_branch
      %99 = sbr.rel (0) target = $region21
    $region20: #{_forward.1} parent=1 // pred_region
      %s101 = ssub.s32 16, 16
      %102 = vsyncadd [#allocation7], %s101
      %s104 = sshll.u32 [#allocation6], 4
      %s105 = int_to_ptr.vmem [resolvable:$true] %s104
      %107 = dma.vmem_to_hbm [thread:$0]  %s105, 16, %s2, [#allocation7]
    $region21: #{_forward.1} parent=1 // pred_fallthru
      _
    // Predicated region
    $region22: #{_forward.1} parent=1 // pred_check
      _
    $region23: #{_forward.1} parent=1 // pred_check_branch
      %109 = sbr.rel (0) target = $region25
    $region24: #{_forward.1} parent=1 // pred_region
      %110 = dma.done [#allocation5], 16
    $region25: #{_forward.1} parent=1 // pred_fallthru
      _
    // Predicated region
    $region26: #{_forward.1} parent=1 // pred_check
      _
    $region27: #{_forward.1} parent=1 // pred_check_branch
      %112 = sbr.rel (0) target = $region29
    $region28: #{_forward.1} parent=1 // pred_region
      %113 = dma.done [#allocation7], 16
    $region29: #{_forward.1} parent=1 // pred_fallthru
      _
    %114 = vsyncpa [#allocation5], 1
    %115 = vsyncpa [#allocation7], 1

</llo_original>
